<compile_context>
chip_gen: v5e
topology: v5e:2x2
jax: 0.10.0
libtpu: 0.0.40
codegen_flags: <defaults>
</compile_context>

<pallas_src>
import functools

import jax
import jax.numpy as jnp
from jax.experimental import pallas as pl
from jax.experimental.pallas import tpu as pltpu

_LANE = 128
_SMALL_K = 4          # contractions this small run on the VPU, not the MXU
_MIN_SPLIT = 1024     # smallest per-step tile worth splitting across 2 TCs


def _round_up(x, m):
    return ((x + m - 1) // m) * m


def _mlp_kernel(*refs, n_layers, compute_dtype):
    """Fused MLP in transposed (batch-on-lanes) layout.

    refs = (xT_ref, w0_ref, b0_ref, ..., w{L-1}_ref, b{L-1}_ref, outT_ref)
      xT_ref:   [D_in,  block]   (lane axis = batch tile)
      w_i:      [out_i, in_i]    (native PyTorch layout)
      b_i:      [out_i, 1]
      outT_ref: [D_out, block]

    Padded batch columns flow through harmlessly (tanh(0) = 0) and are sliced
    off in the wrapper.  Any future in-kernel reduction over the batch axis
    (e.g. a fused loss) must mask them.
    """
    x_ref = refs[0]
    out_ref = refs[-1]
    param_refs = refs[1:-1]

    h = x_ref[...].astype(jnp.float32)                          # [D_in, block]
    for i in range(n_layers):
        w = param_refs[2 * i][...]                              # [out, in]
        b = param_refs[2 * i + 1][...]                          # [out, 1]
        k = w.shape[1]
        if k <= _SMALL_K:
            # Tiny contraction: broadcast-FMAs on the VPU (skips an almost
            # empty MXU pass, frees the vector-extended slot).
            acc = w[:, 0:1].astype(jnp.float32) * h[0:1, :]
            for j in range(1, k):
                acc = acc + w[:, j:j + 1].astype(jnp.float32) * h[j:j + 1, :]
            h = acc + b
        else:
            h = jnp.dot(w.astype(compute_dtype), h.astype(compute_dtype),
                        preferred_element_type=jnp.float32) + b
        if i < n_layers - 1:
            h = jnp.tanh(h.astype(compute_dtype)).astype(jnp.float32)
    out_ref[...] = h.astype(out_ref.dtype)


def mlp_forward(x, weights, biases, *, block_cols=4096,
                compute_dtype=jnp.float32):
    """Run the fused MLP Pallas kernel.

    x:       [N, layers[0]]                    float32
    weights: list of [layers[i+1], layers[i]]  float32 (PyTorch [out, in])
    biases:  list of [layers[i+1], 1]          float32
    returns: [N, layers[-1]]
    """
    n, d_in = x.shape
    d_out = weights[-1].shape[0]
    n_layers = len(weights)

    # --- pick the batch tile (multiple of 128 lanes) ------------------------
    block_cols = max(_LANE, _round_up(block_cols, _LANE))
    n_lane = _round_up(n, _LANE)
    if n_lane > block_cols:
        block = block_cols                               # >= 2 grid steps
    elif n_lane >= 2 * _MIN_SPLIT:
        block = _round_up(-(-n_lane // 2), _LANE)        # 2 steps -> both v7x TCs
    else:
        block = n_lane                                   # whole batch, one step
    n_pad = pl.cdiv(n, block) * block

    # Pad (only if needed) + transpose; XLA fuses these into a single copy,
    # handing the kernel a lane-dense [D_in, n_pad] slab.
    if n_pad != n:
        x = jnp.pad(x, ((0, n_pad - n), (0, 0)))
    xT = x.T

    in_specs = [pl.BlockSpec((d_in, block), lambda i: (0, i))]
    operands = [xT]
    for w, b in zip(weights, biases):
        in_specs.append(pl.BlockSpec(w.shape, lambda i: (0, 0)))   # resident
        in_specs.append(pl.BlockSpec(b.shape, lambda i: (0, 0)))   # resident
        operands.append(w)
        operands.append(b)
    out_spec = pl.BlockSpec((d_out, block), lambda i: (0, i))

    # Scoped-VMEM budget: per-step footprint with generous headroom so big
    # tiles don't trip v5e's 16 MiB default; capped below v7x's 64 MiB.
    hidden_max = max(max(w.shape) for w in weights)
    params_bytes = sum(w.size + b.size for w, b in zip(weights, biases)) * 4
    est = (2 * (d_in + d_out) * block * 4      # double-buffered x / out tiles
           + 6 * hidden_max * block * 4        # live activations / temporaries
           + 2 * params_bytes)
    vmem_limit = int(min(48 * 2 ** 20, max(32 * 2 ** 20, 2 * est)))

    kernel = functools.partial(_mlp_kernel, n_layers=n_layers,
                               compute_dtype=compute_dtype)

    outT = pl.pallas_call(
        kernel,
        out_shape=jax.ShapeDtypeStruct((d_out, n_pad), x.dtype),
        grid_spec=pltpu.PrefetchScalarGridSpec(
            num_scalar_prefetch=0,
            grid=(n_pad // block,),
            in_specs=in_specs,
            out_specs=out_spec,
        ),
        compiler_params=pltpu.CompilerParams(
            dimension_semantics=("parallel",),   # shard steps across v7x's 2 TCs
            vmem_limit_bytes=vmem_limit,
        ),
    )(*operands)

    if d_out == 1:
        # Cheap slice + reshape instead of transposing the full batch back.
        return outT[0, :n].reshape(n, 1)
    return outT[:, :n].T


def init_mlp_params(layers, key):
    """Xavier-normal weights, zero biases (matches the PyTorch __init__).

    Weights stored in native PyTorch [out, in] layout; biases as [out, 1].
    """
    weights, biases = [], []
    for i in range(len(layers) - 1):
        fan_in, fan_out = layers[i], layers[i + 1]
        key, sub = jax.random.split(key)
        std = (2.0 / (fan_in + fan_out)) ** 0.5
        w = std * jax.random.normal(sub, (fan_out, fan_in), dtype=jnp.float32)
        b = jnp.zeros((fan_out, 1), dtype=jnp.float32)
        weights.append(w)
        biases.append(b)
    return weights, biases


def mlp_reference(x, weights, biases):
    """Pure-JAX reference of the same forward pass (standard [N, D] layout)."""
    h = x
    n_layers = len(weights)
    for i, (w, b) in enumerate(zip(weights, biases)):
        h = h @ w.T + b.T
        if i < n_layers - 1:
            h = jnp.tanh(h)
    return h


if __name__ == "__main__":
    # PINN-style MLP: input dim 2 -> hidden 32 -> hidden 32 -> output 1
    layers = [2, 32, 32, 1]
    batch = 1000   # deliberately not a multiple of 128 to exercise padding

    key = jax.random.PRNGKey(0)
    key, xkey = jax.random.split(key)
    x = jax.random.normal(xkey, (batch, layers[0]), dtype=jnp.float32)

    weights, biases = init_mlp_params(layers, key)

    out = mlp_forward(x, weights, biases)
    out = jax.block_until_ready(out)

    ref = mlp_reference(x, weights, biases)
    assert out.shape == (batch, layers[-1])
    assert jnp.allclose(out, ref, atol=1e-4, rtol=1e-4), "mismatch vs reference"

    print("KERNEL_OK")
</pallas_src>

<mosaic_0001>
module attributes {stable_mosaic.version = 11 : i64} {
  func.func @_mlp_kernel(%arg0: i32, %arg1: memref<2x1024xf32, #tpu.memory_space<vmem>>, %arg2: memref<32x2xf32, #tpu.memory_space<vmem>>, %arg3: memref<32x1xf32, #tpu.memory_space<vmem>>, %arg4: memref<32x32xf32, #tpu.memory_space<vmem>>, %arg5: memref<32x1xf32, #tpu.memory_space<vmem>>, %arg6: memref<1x32xf32, #tpu.memory_space<vmem>>, %arg7: memref<1x1xf32, #tpu.memory_space<vmem>>, %arg8: memref<1x1024xf32, #tpu.memory_space<vmem>>) attributes {dimension_semantics = [#tpu.dimension_semantics<parallel>], iteration_bounds = array<i64: 1>, scalar_prefetch = 0 : i64, scratch_operands = 0 : i64, tpu.core_type = #tpu.core_type<tc>, window_params = [{transform_indices = @transform_0, window_bounds = array<i64: 2, 1024>}, {pipeline_mode = #tpu.pipeline_mode<synchronous>, transform_indices = @transform_1, window_bounds = array<i64: 32, 2>}, {pipeline_mode = #tpu.pipeline_mode<synchronous>, transform_indices = @transform_2, window_bounds = array<i64: 32, 1>}, {pipeline_mode = #tpu.pipeline_mode<synchronous>, transform_indices = @transform_3, window_bounds = array<i64: 32, 32>}, {pipeline_mode = #tpu.pipeline_mode<synchronous>, transform_indices = @transform_4, window_bounds = array<i64: 32, 1>}, {pipeline_mode = #tpu.pipeline_mode<synchronous>, transform_indices = @transform_5, window_bounds = array<i64: 1, 32>}, {pipeline_mode = #tpu.pipeline_mode<synchronous>, transform_indices = @transform_6, window_bounds = array<i64: 1, 1>}, {transform_indices = @transform_7, window_bounds = array<i64: 1, 1024>}]} {
    %c0 = arith.constant 0 : index
    %c0_0 = arith.constant 0 : index
    %0 = vector.load %arg1[%c0, %c0_0] : memref<2x1024xf32, #tpu.memory_space<vmem>>, vector<2x1024xf32>
    %c0_1 = arith.constant 0 : index
    %c0_2 = arith.constant 0 : index
    %1 = vector.load %arg2[%c0_1, %c0_2] : memref<32x2xf32, #tpu.memory_space<vmem>>, vector<32x2xf32>
    %c0_3 = arith.constant 0 : index
    %c0_4 = arith.constant 0 : index
    %2 = vector.load %arg3[%c0_3, %c0_4] : memref<32x1xf32, #tpu.memory_space<vmem>>, vector<32x1xf32>
    %3 = vector.extract_strided_slice %1 {offsets = [0, 0], sizes = [32, 1], strides = [1, 1]} : vector<32x2xf32> to vector<32x1xf32>
    %4 = vector.extract_strided_slice %0 {offsets = [0, 0], sizes = [1, 1024], strides = [1, 1]} : vector<2x1024xf32> to vector<1x1024xf32>
    %5 = vector.broadcast %3 : vector<32x1xf32> to vector<32x1024xf32>
    %6 = vector.broadcast %4 : vector<1x1024xf32> to vector<32x1024xf32>
    %7 = arith.mulf %5, %6 : vector<32x1024xf32>
    %8 = vector.extract_strided_slice %1 {offsets = [0, 1], sizes = [32, 1], strides = [1, 1]} : vector<32x2xf32> to vector<32x1xf32>
    %9 = vector.extract_strided_slice %0 {offsets = [1, 0], sizes = [1, 1024], strides = [1, 1]} : vector<2x1024xf32> to vector<1x1024xf32>
    %10 = vector.broadcast %8 : vector<32x1xf32> to vector<32x1024xf32>
    %11 = vector.broadcast %9 : vector<1x1024xf32> to vector<32x1024xf32>
    %12 = arith.mulf %10, %11 : vector<32x1024xf32>
    %13 = arith.addf %7, %12 : vector<32x1024xf32>
    %14 = vector.broadcast %2 : vector<32x1xf32> to vector<32x1024xf32>
    %15 = arith.addf %13, %14 : vector<32x1024xf32>
    %16 = math.tanh %15 : vector<32x1024xf32>
    %c0_5 = arith.constant 0 : index
    %c0_6 = arith.constant 0 : index
    %17 = vector.load %arg4[%c0_5, %c0_6] : memref<32x32xf32, #tpu.memory_space<vmem>>, vector<32x32xf32>
    %c0_7 = arith.constant 0 : index
    %c0_8 = arith.constant 0 : index
    %18 = vector.load %arg5[%c0_7, %c0_8] : memref<32x1xf32, #tpu.memory_space<vmem>>, vector<32x1xf32>
    %cst = arith.constant dense<0.000000e+00> : vector<32x1024xf32>
    %19 = tpu.matmul %17, %16, %cst {dimension_numbers = #tpu.dot_dimension_numbers<[1], [0], [0], [1], [0, 0, 1, 1], [], []>} : vector<32x32xf32>, vector<32x1024xf32>, vector<32x1024xf32> -> vector<32x1024xf32>
    %20 = vector.broadcast %18 : vector<32x1xf32> to vector<32x1024xf32>
    %21 = arith.addf %19, %20 : vector<32x1024xf32>
    %22 = math.tanh %21 : vector<32x1024xf32>
    %c0_9 = arith.constant 0 : index
    %c0_10 = arith.constant 0 : index
    %23 = vector.load %arg6[%c0_9, %c0_10] : memref<1x32xf32, #tpu.memory_space<vmem>>, vector<1x32xf32>
    %c0_11 = arith.constant 0 : index
    %c0_12 = arith.constant 0 : index
    %24 = vector.load %arg7[%c0_11, %c0_12] : memref<1x1xf32, #tpu.memory_space<vmem>>, vector<1x1xf32>
    %cst_13 = arith.constant dense<0.000000e+00> : vector<1x1024xf32>
    %25 = tpu.matmul %23, %22, %cst_13 {dimension_numbers = #tpu.dot_dimension_numbers<[1], [0], [0], [1], [0, 0, 1, 1], [], []>} : vector<1x32xf32>, vector<32x1024xf32>, vector<1x1024xf32> -> vector<1x1024xf32>
    %26 = vector.broadcast %24 : vector<1x1xf32> to vector<1x1024xf32>
    %27 = arith.addf %25, %26 : vector<1x1024xf32>
    %c0_14 = arith.constant 0 : index
    %c0_15 = arith.constant 0 : index
    %28 = vector.load %arg8[%c0_14, %c0_15] : memref<1x1024xf32, #tpu.memory_space<vmem>>, vector<1x1024xf32>
    tpu.vector_store %arg8[%c0_14, %c0_15], %27 {strides = array<i32>} : memref<1x1024xf32, #tpu.memory_space<vmem>>, vector<1x1024xf32>,
    return
  }
  func.func @transform_0(%arg0: i32) -> (i32, i32) {
    %c0_i32 = arith.constant 0 : i32
    %c0_i32_0 = arith.constant 0 : i32
    return %c0_i32, %arg0 : i32, i32
  }
  func.func @transform_1(%arg0: i32) -> (i32, i32) {
    %c0_i32 = arith.constant 0 : i32
    %c0_i32_0 = arith.constant 0 : i32
    %c0_i32_1 = arith.constant 0 : i32
    return %c0_i32, %c0_i32_0 : i32, i32
  }
  func.func @transform_2(%arg0: i32) -> (i32, i32) {
    %c0_i32 = arith.constant 0 : i32
    %c0_i32_0 = arith.constant 0 : i32
    %c0_i32_1 = arith.constant 0 : i32
    return %c0_i32, %c0_i32_0 : i32, i32
  }
  func.func @transform_3(%arg0: i32) -> (i32, i32) {
    %c0_i32 = arith.constant 0 : i32
    %c0_i32_0 = arith.constant 0 : i32
    %c0_i32_1 = arith.constant 0 : i32
    return %c0_i32, %c0_i32_0 : i32, i32
  }
  func.func @transform_4(%arg0: i32) -> (i32, i32) {
    %c0_i32 = arith.constant 0 : i32
    %c0_i32_0 = arith.constant 0 : i32
    %c0_i32_1 = arith.constant 0 : i32
    return %c0_i32, %c0_i32_0 : i32, i32
  }
  func.func @transform_5(%arg0: i32) -> (i32, i32) {
    %c0_i32 = arith.constant 0 : i32
    %c0_i32_0 = arith.constant 0 : i32
    %c0_i32_1 = arith.constant 0 : i32
    return %c0_i32, %c0_i32_0 : i32, i32
  }
  func.func @transform_6(%arg0: i32) -> (i32, i32) {
    %c0_i32 = arith.constant 0 : i32
    %c0_i32_0 = arith.constant 0 : i32
    %c0_i32_1 = arith.constant 0 : i32
    return %c0_i32, %c0_i32_0 : i32, i32
  }
  func.func @transform_7(%arg0: i32) -> (i32, i32) {
    %c0_i32 = arith.constant 0 : i32
    %c0_i32_0 = arith.constant 0 : i32
    return %c0_i32, %arg0 : i32, i32
  }
}

</mosaic_0001>

<llo_original>
// kernel: tpu_custom_call.1
$region0: #{tpu_custom_call.1}
  #allocation0 [shape = 'u32[]', space=smem, size = 0x4, offset = 0x4, fixed_abs, tag = 'smem constant byte address 0x4 - core index']
  #allocation1 [shape = 'u32[72,128]{1,0:T(1,128)}', space=vmem, size = 0x9000, scoped, tag = 'internal scratch']
  #allocation2 [shape = 'f32[1,1]{1,0:T(1,128)S(1)}', space=vmem, size = 0x200, scoped, tag = 'scoped memory for tpu_custom_call.1']
  %s0 = inlined_call_operand.vmem [shape: f32[2,1024], index: 0, kind: input, shape index: {}]
  %s1 = inlined_call_operand.vmem [shape: f32[32,2], index: 1, kind: input, shape index: {}]
  %s2 = inlined_call_operand.vmem [shape: f32[32,1], index: 2, kind: input, shape index: {}]
  %s3 = inlined_call_operand.vmem [shape: f32[32,32], index: 3, kind: input, shape index: {}]
  %s4 = inlined_call_operand.vmem [shape: f32[32,1], index: 4, kind: input, shape index: {}]
  %s5 = inlined_call_operand.vmem [shape: f32[1,32], index: 5, kind: input, shape index: {}]
  %s6 = inlined_call_operand.<no memory space> [shape: f32[1,1], index: 6, kind: input, shape index: {}]
  %s7 = inlined_call_operand.hbm [shape: f32[1,1024], index: 7, kind: output, shape index: {}]
  %s8 = sld [smem:[#allocation0]]
  $region38: #{tpu_custom_call.1} parent=0
    _
  %s10 = ssub.s32 1, %s8
  %s11 = scalar_select 0, %s10, %s8
  %v12 = vstv %s6
  %13 = vst [vmem:[#allocation2] sm:$0x1] %v12
  $region1: #{tpu_custom_call.1} parent=0
    #allocation3 [shape = 'u8[4096]{0}', space=vmem, size = 0x1000, scoped, tag = 'output window, operand 0, single buffered']
    #allocation4 [shape = 's32[1]{0}', space=sflag, size = 0x4, scoped, tag = 'scoped memory for tpu_custom_call.1']
    %14 = vsyncpa [#allocation4], 0
    // Predicated region
    $region2: #{tpu_custom_call.1} parent=1 // pred_check
      _
    $region3: #{tpu_custom_call.1} parent=1 // pred_check_branch
      %16 = sbr.rel (0) target = $region5
    $region4: #{tpu_custom_call.1} parent=1 // pred_region
      _
    $region5: #{tpu_custom_call.1} parent=1 // pred_fallthru
      _
    // Predicated region
    $region6: #{tpu_custom_call.1} parent=1 // pred_check
      _
    $region7: #{tpu_custom_call.1} parent=1 // pred_check_branch
      %18 = sbr.rel (0) target = $region9
    $region8: #{tpu_custom_call.1} parent=1 // pred_region
      _
    $region9: #{tpu_custom_call.1} parent=1 // pred_fallthru
      _
    // Predicated region
    $region10: #{tpu_custom_call.1} parent=1 // pred_check
      _
    $region11: #{tpu_custom_call.1} parent=1 // pred_check_branch
      %20 = sbr.rel (0) target = $region13
    $region12: #{tpu_custom_call.1} parent=1 // pred_region
      _
    $region13: #{tpu_custom_call.1} parent=1 // pred_fallthru
      _
    // Predicated region
    $region14: #{tpu_custom_call.1} parent=1 // pred_check
      _
    $region15: #{tpu_custom_call.1} parent=1 // pred_check_branch
      %22 = sbr.rel (0) target = $region17
    $region16: #{tpu_custom_call.1} parent=1 // pred_region
      _
    $region17: #{tpu_custom_call.1} parent=1 // pred_fallthru
      _
    // Predicated region
    $region18: #{tpu_custom_call.1} parent=1 // pred_check
      _
    $region19: #{tpu_custom_call.1} parent=1 // pred_check_branch
      %24 = sbr.rel (0) target = $region21
    $region20: #{tpu_custom_call.1} parent=1 // pred_region
      _
    $region21: #{tpu_custom_call.1} parent=1 // pred_fallthru
      _
    // Predicated region
    $region22: #{tpu_custom_call.1} parent=1 // pred_check
      _
    $region23: #{tpu_custom_call.1} parent=1 // pred_check_branch
      %26 = sbr.rel (0) target = $region25
    $region24: #{tpu_custom_call.1} parent=1 // pred_region
      _
    $region25: #{tpu_custom_call.1} parent=1 // pred_fallthru
      _
    // Predicated region
    $region26: #{tpu_custom_call.1} parent=1 // pred_check
      _
    $region27: #{tpu_custom_call.1} parent=1 // pred_check_branch
      %28 = sbr.rel (0) target = $region29
    $region28: #{tpu_custom_call.1} parent=1 // pred_region
      _
    $region29: #{tpu_custom_call.1} parent=1 // pred_fallthru
      _
    %v29 = vld [vmem:[%s0] sm:$0xff]
    %v30 = vld [vmem:[%s0 + $0x8] sm:$0xff]
    %v31 = vld [vmem:[%s1] sm:$0xff]
    %v32 = vld [vmem:[%s1 + $0x8] sm:$0xff]
    %v33 = vld [vmem:[%s1 + $0x10] sm:$0xff]
    %v34 = vld [vmem:[%s1 + $0x18] sm:$0xff]
    %v35 = vld [vmem:[%s2] sm:$0xff]
    %v36 = vld [vmem:[%s2 + $0x8] sm:$0xff]
    %v37 = vld [vmem:[%s2 + $0x10] sm:$0xff]
    %v38 = vld [vmem:[%s2 + $0x18] sm:$0xff]
    %40 = vset.pattern.permute.xlu0 0
    %41 = vperm.xlu0 %40, %v31
    %v42 = vpop.permute.xlu0 %41
    %45 = vset.pattern.permute.xlu0 0
    %46 = vperm.xlu0 %45, %v32
    %v47 = vpop.permute.xlu0 %46
    %50 = vset.pattern.permute.xlu0 0
    %51 = vperm.xlu0 %50, %v33
    %v52 = vpop.permute.xlu0 %51
    %55 = vset.pattern.permute.xlu0 0
    %56 = vperm.xlu0 %55, %v34
    %v57 = vpop.permute.xlu0 %56
    %v61 = vperm.slane %v29, 0
    %v62 = vperm.slane %v29, 2
    %v63 = vperm.slane %v29, 4
    %v64 = vperm.slane %v29, 6
    %v65 = vperm.slane %v30, 0
    %v66 = vperm.slane %v30, 2
    %v67 = vperm.slane %v30, 4
    %v68 = vperm.slane %v30, 6
    %v77 = vperm.slane %v61, 0
    %v78 = vperm.slane %v62, 0
    %v79 = vperm.slane %v63, 0
    %v80 = vperm.slane %v64, 0
    %v81 = vperm.slane %v65, 0
    %v82 = vperm.slane %v66, 0
    %v83 = vperm.slane %v67, 0
    %v84 = vperm.slane %v68, 0
    %v85 = vmul.f32 %v42, %v77
    %v86 = vmul.f32 %v42, %v78
    %v87 = vmul.f32 %v42, %v79
    %v88 = vmul.f32 %v42, %v80
    %v89 = vmul.f32 %v42, %v81
    %v90 = vmul.f32 %v42, %v82
    %v91 = vmul.f32 %v42, %v83
    %v92 = vmul.f32 %v42, %v84
    %v93 = vmul.f32 %v47, %v77
    %v94 = vmul.f32 %v47, %v78
    %v95 = vmul.f32 %v47, %v79
    %v96 = vmul.f32 %v47, %v80
    %v97 = vmul.f32 %v47, %v81
    %v98 = vmul.f32 %v47, %v82
    %v99 = vmul.f32 %v47, %v83
    %v100 = vmul.f32 %v47, %v84
    %v101 = vmul.f32 %v52, %v77
    %v102 = vmul.f32 %v52, %v78
    %v103 = vmul.f32 %v52, %v79
    %v104 = vmul.f32 %v52, %v80
    %v105 = vmul.f32 %v52, %v81
    %v106 = vmul.f32 %v52, %v82
    %v107 = vmul.f32 %v52, %v83
    %v108 = vmul.f32 %v52, %v84
    %v109 = vmul.f32 %v57, %v77
    %v110 = vmul.f32 %v57, %v78
    %v111 = vmul.f32 %v57, %v79
    %v112 = vmul.f32 %v57, %v80
    %v113 = vmul.f32 %v57, %v81
    %v114 = vmul.f32 %v57, %v82
    %v115 = vmul.f32 %v57, %v83
    %v116 = vmul.f32 %v57, %v84
    %117 = vset.pattern.permute.xlu0 1
    %118 = vperm.xlu0 %117, %v31
    %v119 = vpop.permute.xlu0 %118
    %121 = vset.pattern.permute.xlu0 1
    %122 = vperm.xlu0 %121, %v32
    %v123 = vpop.permute.xlu0 %122
    %125 = vset.pattern.permute.xlu0 1
    %126 = vperm.xlu0 %125, %v33
    %v127 = vpop.permute.xlu0 %126
    %129 = vset.pattern.permute.xlu0 1
    %130 = vperm.xlu0 %129, %v34
    %v131 = vpop.permute.xlu0 %130
    %v133 = vperm.slane %v29, 1
    %v134 = vperm.slane %v29, 3
    %v135 = vperm.slane %v29, 5
    %v136 = vperm.slane %v29, 7
    %v137 = vperm.slane %v30, 1
    %v138 = vperm.slane %v30, 3
    %v139 = vperm.slane %v30, 5
    %v140 = vperm.slane %v30, 7
    %v149 = vperm.slane %v133, 1
    %v150 = vperm.slane %v134, 1
    %v151 = vperm.slane %v135, 1
    %v152 = vperm.slane %v136, 1
    %v153 = vperm.slane %v137, 1
    %v154 = vperm.slane %v138, 1
    %v155 = vperm.slane %v139, 1
    %v156 = vperm.slane %v140, 1
    %v157 = vmul.f32 %v119, %v149
    %v158 = vmul.f32 %v119, %v150
    %v159 = vmul.f32 %v119, %v151
    %v160 = vmul.f32 %v119, %v152
    %v161 = vmul.f32 %v119, %v153
    %v162 = vmul.f32 %v119, %v154
    %v163 = vmul.f32 %v119, %v155
    %v164 = vmul.f32 %v119, %v156
    %v165 = vmul.f32 %v123, %v149
    %v166 = vmul.f32 %v123, %v150
    %v167 = vmul.f32 %v123, %v151
    %v168 = vmul.f32 %v123, %v152
    %v169 = vmul.f32 %v123, %v153
    %v170 = vmul.f32 %v123, %v154
    %v171 = vmul.f32 %v123, %v155
    %v172 = vmul.f32 %v123, %v156
    %v173 = vmul.f32 %v127, %v149
    %v174 = vmul.f32 %v127, %v150
    %v175 = vmul.f32 %v127, %v151
    %v176 = vmul.f32 %v127, %v152
    %v177 = vmul.f32 %v127, %v153
    %v178 = vmul.f32 %v127, %v154
    %v179 = vmul.f32 %v127, %v155
    %v180 = vmul.f32 %v127, %v156
    %v181 = vmul.f32 %v131, %v149
    %v182 = vmul.f32 %v131, %v150
    %v183 = vmul.f32 %v131, %v151
    %v184 = vmul.f32 %v131, %v152
    %v185 = vmul.f32 %v131, %v153
    %v186 = vmul.f32 %v131, %v154
    %v187 = vmul.f32 %v131, %v155
    %v188 = vmul.f32 %v131, %v156
    %v189 = vadd.f32 %v85, %v157
    %v190 = vadd.f32 %v86, %v158
    %v191 = vadd.f32 %v87, %v159
    %v192 = vadd.f32 %v88, %v160
    %v193 = vadd.f32 %v89, %v161
    %v194 = vadd.f32 %v90, %v162
    %v195 = vadd.f32 %v91, %v163
    %v196 = vadd.f32 %v92, %v164
    %v197 = vadd.f32 %v93, %v165
    %v198 = vadd.f32 %v94, %v166
    %v199 = vadd.f32 %v95, %v167
    %v200 = vadd.f32 %v96, %v168
    %v201 = vadd.f32 %v97, %v169
    %v202 = vadd.f32 %v98, %v170
    %v203 = vadd.f32 %v99, %v171
    %v204 = vadd.f32 %v100, %v172
    %v205 = vadd.f32 %v101, %v173
    %v206 = vadd.f32 %v102, %v174
    %v207 = vadd.f32 %v103, %v175
    %v208 = vadd.f32 %v104, %v176
    %v209 = vadd.f32 %v105, %v177
    %v210 = vadd.f32 %v106, %v178
    %v211 = vadd.f32 %v107, %v179
    %v212 = vadd.f32 %v108, %v180
    %v213 = vadd.f32 %v109, %v181
    %v214 = vadd.f32 %v110, %v182
    %v215 = vadd.f32 %v111, %v183
    %v216 = vadd.f32 %v112, %v184
    %v217 = vadd.f32 %v113, %v185
    %v218 = vadd.f32 %v114, %v186
    %v219 = vadd.f32 %v115, %v187
    %v220 = vadd.f32 %v116, %v188
    %222 = vset.pattern.permute.xlu0 0
    %223 = vperm.xlu0 %222, %v35
    %v224 = vpop.permute.xlu0 %223
    %227 = vset.pattern.permute.xlu0 0
    %228 = vperm.xlu0 %227, %v36
    %v229 = vpop.permute.xlu0 %228
    %232 = vset.pattern.permute.xlu0 0
    %233 = vperm.xlu0 %232, %v37
    %v234 = vpop.permute.xlu0 %233
    %237 = vset.pattern.permute.xlu0 0
    %238 = vperm.xlu0 %237, %v38
    %v239 = vpop.permute.xlu0 %238
    %v241 = vadd.f32 %v189, %v224
    %v242 = vadd.f32 %v190, %v224
    %v243 = vadd.f32 %v191, %v224
    %v244 = vadd.f32 %v192, %v224
    %v245 = vadd.f32 %v193, %v224
    %v246 = vadd.f32 %v194, %v224
    %v247 = vadd.f32 %v195, %v224
    %v248 = vadd.f32 %v196, %v224
    %v249 = vadd.f32 %v197, %v229
    %v250 = vadd.f32 %v198, %v229
    %v251 = vadd.f32 %v199, %v229
    %v252 = vadd.f32 %v200, %v229
    %v253 = vadd.f32 %v201, %v229
    %v254 = vadd.f32 %v202, %v229
    %v255 = vadd.f32 %v203, %v229
    %v256 = vadd.f32 %v204, %v229
    %v257 = vadd.f32 %v205, %v234
    %v258 = vadd.f32 %v206, %v234
    %v259 = vadd.f32 %v207, %v234
    %v260 = vadd.f32 %v208, %v234
    %v261 = vadd.f32 %v209, %v234
    %v262 = vadd.f32 %v210, %v234
    %v263 = vadd.f32 %v211, %v234
    %v264 = vadd.f32 %v212, %v234
    %v265 = vadd.f32 %v213, %v239
    %v266 = vadd.f32 %v214, %v239
    %v267 = vadd.f32 %v215, %v239
    %v268 = vadd.f32 %v216, %v239
    %v269 = vadd.f32 %v217, %v239
    %v270 = vadd.f32 %v218, %v239
    %v271 = vadd.f32 %v219, %v239
    %v272 = vadd.f32 %v220, %v239
    %v273 = vtanh.pop %v241
    %v274 = vtanh.pop %v242
    %v275 = vtanh.pop %v243
    %v276 = vtanh.pop %v244
    %v277 = vtanh.pop %v245
    %v278 = vtanh.pop %v246
    %v279 = vtanh.pop %v247
    %v280 = vtanh.pop %v248
    %v281 = vtanh.pop %v249
    %v282 = vtanh.pop %v250
    %v283 = vtanh.pop %v251
    %v284 = vtanh.pop %v252
    %v285 = vtanh.pop %v253
    %v286 = vtanh.pop %v254
    %v287 = vtanh.pop %v255
    %v288 = vtanh.pop %v256
    %v289 = vtanh.pop %v257
    %v290 = vtanh.pop %v258
    %v291 = vtanh.pop %v259
    %v292 = vtanh.pop %v260
    %v293 = vtanh.pop %v261
    %v294 = vtanh.pop %v262
    %v295 = vtanh.pop %v263
    %v296 = vtanh.pop %v264
    %v297 = vtanh.pop %v265
    %v298 = vtanh.pop %v266
    %v299 = vtanh.pop %v267
    %v300 = vtanh.pop %v268
    %v301 = vtanh.pop %v269
    %v302 = vtanh.pop %v270
    %v303 = vtanh.pop %v271
    %v304 = vtanh.pop %v272
    %v305 = vld [vmem:[%s3] sm:$0xff]
    %v306 = vld [vmem:[%s3 + $0x8] sm:$0xff]
    %v307 = vld [vmem:[%s3 + $0x10] sm:$0xff]
    %v308 = vld [vmem:[%s3 + $0x18] sm:$0xff]
    %v309 = vld [vmem:[%s4] sm:$0xff]
    %v310 = vld [vmem:[%s4 + $0x8] sm:$0xff]
    %v311 = vld [vmem:[%s4 + $0x10] sm:$0xff]
    %v312 = vld [vmem:[%s4 + $0x18] sm:$0xff]
    %314 = vset.pattern.permute.xlu0 0
    %315 = vperm.xlu0 %314, %v309
    %v316 = vpop.permute.xlu0 %315
    %319 = vset.pattern.permute.xlu0 0
    %320 = vperm.xlu0 %319, %v310
    %v321 = vpop.permute.xlu0 %320
    %324 = vset.pattern.permute.xlu0 0
    %325 = vperm.xlu0 %324, %v311
    %v326 = vpop.permute.xlu0 %325
    %329 = vset.pattern.permute.xlu0 0
    %330 = vperm.xlu0 %329, %v312
    %v331 = vpop.permute.xlu0 %330
    %vm333 = vcmask 261120
    %v335 = vsel %vm333, %v305, 0
    %v338 = vsel %vm333, %v306, 0
    %v341 = vsel %vm333, %v307, 0
    %v344 = vsel %vm333, %v308, 0
    %346 = vmatpush.msra.mxu0 0.0
    %347 = vmatpush.msra.mxu0 0.0
    %348 = vmatpush.msra.mxu0 0.0
    %349 = vmatpush.msra.mxu0 0.0
    %350 = vmatpush.msra.mxu0 0.0
    %351 = vmatpush.msra.mxu0 0.0
    %352 = vmatpush.msra.mxu0 0.0
    %353 = vmatpush.msra.mxu0 0.0
    %354 = vmatpush.msra.mxu0 0.0
    %355 = vmatpush.msra.mxu0 0.0
    %356 = vmatpush.msra.mxu0 0.0
    %357 = vmatpush.msra.mxu0 0.0
    %358 = vmatpush.msra.mxu0 %v297
    %359 = vmatpush.msra.mxu0 %v289
    %360 = vmatpush.msra.mxu0 %v281
    %361 = vmatpush.msra.mxu0 %v273
    %362 = vmatmul.f32.gmra.mxu0 %v335
    %v363 = vpop.f32.mrf.mxu0
    %v364 = vadd.f32 %v316, %v363
    %365 = vmatmul.f32.gmra.mxu0 %v338
    %v366 = vpop.f32.mrf.mxu0
    %v367 = vadd.f32 %v321, %v366
    %368 = vmatmul.f32.gmra.mxu0 %v341
    %v369 = vpop.f32.mrf.mxu0
    %v370 = vadd.f32 %v326, %v369
    %371 = vmatmul.f32.gmra.mxu0 %v344
    %v372 = vpop.f32.mrf.mxu0
    %v373 = vadd.f32 %v331, %v372
    %374 = vdwg.mxu0
    %375 = vmatpush.msra.mxu0 0.0
    %376 = vmatpush.msra.mxu0 0.0
    %377 = vmatpush.msra.mxu0 0.0
    %378 = vmatpush.msra.mxu0 0.0
    %379 = vmatpush.msra.mxu0 0.0
    %380 = vmatpush.msra.mxu0 0.0
    %381 = vmatpush.msra.mxu0 0.0
    %382 = vmatpush.msra.mxu0 0.0
    %383 = vmatpush.msra.mxu0 0.0
    %384 = vmatpush.msra.mxu0 0.0
    %385 = vmatpush.msra.mxu0 0.0
    %386 = vmatpush.msra.mxu0 0.0
    %387 = vmatpush.msra.mxu0 %v298
    %388 = vmatpush.msra.mxu0 %v290
    %389 = vmatpush.msra.mxu0 %v282
    %390 = vmatpush.msra.mxu0 %v274
    %391 = vmatmul.f32.gmra.mxu0 %v335
    %v392 = vpop.f32.mrf.mxu0
    %v393 = vadd.f32 %v316, %v392
    %394 = vmatmul.f32.gmra.mxu0 %v338
    %v395 = vpop.f32.mrf.mxu0
    %v396 = vadd.f32 %v321, %v395
    %397 = vmatmul.f32.gmra.mxu0 %v341
    %v398 = vpop.f32.mrf.mxu0
    %v399 = vadd.f32 %v326, %v398
    %400 = vmatmul.f32.gmra.mxu0 %v344
    %v401 = vpop.f32.mrf.mxu0
    %v402 = vadd.f32 %v331, %v401
    %403 = vdwg.mxu0
    %404 = vmatpush.msra.mxu0 0.0
    %405 = vmatpush.msra.mxu0 0.0
    %406 = vmatpush.msra.mxu0 0.0
    %407 = vmatpush.msra.mxu0 0.0
    %408 = vmatpush.msra.mxu0 0.0
    %409 = vmatpush.msra.mxu0 0.0
    %410 = vmatpush.msra.mxu0 0.0
    %411 = vmatpush.msra.mxu0 0.0
    %412 = vmatpush.msra.mxu0 0.0
    %413 = vmatpush.msra.mxu0 0.0
    %414 = vmatpush.msra.mxu0 0.0
    %415 = vmatpush.msra.mxu0 0.0
    %416 = vmatpush.msra.mxu0 %v299
    %417 = vmatpush.msra.mxu0 %v291
    %418 = vmatpush.msra.mxu0 %v283
    %419 = vmatpush.msra.mxu0 %v275
    %420 = vmatmul.f32.gmra.mxu0 %v335
    %v421 = vpop.f32.mrf.mxu0
    %v422 = vadd.f32 %v316, %v421
    %423 = vmatmul.f32.gmra.mxu0 %v338
    %v424 = vpop.f32.mrf.mxu0
    %v425 = vadd.f32 %v321, %v424
    %426 = vmatmul.f32.gmra.mxu0 %v341
    %v427 = vpop.f32.mrf.mxu0
    %v428 = vadd.f32 %v326, %v427
    %429 = vmatmul.f32.gmra.mxu0 %v344
    %v430 = vpop.f32.mrf.mxu0
    %v431 = vadd.f32 %v331, %v430
    %432 = vdwg.mxu0
    %433 = vmatpush.msra.mxu0 0.0
    %434 = vmatpush.msra.mxu0 0.0
    %435 = vmatpush.msra.mxu0 0.0
    %436 = vmatpush.msra.mxu0 0.0
    %437 = vmatpush.msra.mxu0 0.0
    %438 = vmatpush.msra.mxu0 0.0
    %439 = vmatpush.msra.mxu0 0.0
    %440 = vmatpush.msra.mxu0 0.0
    %441 = vmatpush.msra.mxu0 0.0
    %442 = vmatpush.msra.mxu0 0.0
    %443 = vmatpush.msra.mxu0 0.0
    %444 = vmatpush.msra.mxu0 0.0
    %445 = vmatpush.msra.mxu0 %v300
    %446 = vmatpush.msra.mxu0 %v292
    %447 = vmatpush.msra.mxu0 %v284
    %448 = vmatpush.msra.mxu0 %v276
    %449 = vmatmul.f32.gmra.mxu0 %v335
    %v450 = vpop.f32.mrf.mxu0
    %v451 = vadd.f32 %v316, %v450
    %452 = vmatmul.f32.gmra.mxu0 %v338
    %v453 = vpop.f32.mrf.mxu0
    %v454 = vadd.f32 %v321, %v453
    %455 = vmatmul.f32.gmra.mxu0 %v341
    %v456 = vpop.f32.mrf.mxu0
    %v457 = vadd.f32 %v326, %v456
    %458 = vmatmul.f32.gmra.mxu0 %v344
    %v459 = vpop.f32.mrf.mxu0
    %v460 = vadd.f32 %v331, %v459
    %461 = vdwg.mxu0
    %462 = vmatpush.msra.mxu0 0.0
    %463 = vmatpush.msra.mxu0 0.0
    %464 = vmatpush.msra.mxu0 0.0
    %465 = vmatpush.msra.mxu0 0.0
    %466 = vmatpush.msra.mxu0 0.0
    %467 = vmatpush.msra.mxu0 0.0
    %468 = vmatpush.msra.mxu0 0.0
    %469 = vmatpush.msra.mxu0 0.0
    %470 = vmatpush.msra.mxu0 0.0
    %471 = vmatpush.msra.mxu0 0.0
    %472 = vmatpush.msra.mxu0 0.0
    %473 = vmatpush.msra.mxu0 0.0
    %474 = vmatpush.msra.mxu0 %v301
    %475 = vmatpush.msra.mxu0 %v293
    %476 = vmatpush.msra.mxu0 %v285
    %477 = vmatpush.msra.mxu0 %v277
    %478 = vmatmul.f32.gmra.mxu0 %v335
    %v479 = vpop.f32.mrf.mxu0
    %v480 = vadd.f32 %v316, %v479
    %481 = vmatmul.f32.gmra.mxu0 %v338
    %v482 = vpop.f32.mrf.mxu0
    %v483 = vadd.f32 %v321, %v482
    %484 = vmatmul.f32.gmra.mxu0 %v341
    %v485 = vpop.f32.mrf.mxu0
    %v486 = vadd.f32 %v326, %v485
    %487 = vmatmul.f32.gmra.mxu0 %v344
    %v488 = vpop.f32.mrf.mxu0
    %v489 = vadd.f32 %v331, %v488
    %490 = vdwg.mxu0
    %491 = vmatpush.msra.mxu0 0.0
    %492 = vmatpush.msra.mxu0 0.0
    %493 = vmatpush.msra.mxu0 0.0
    %494 = vmatpush.msra.mxu0 0.0
    %495 = vmatpush.msra.mxu0 0.0
    %496 = vmatpush.msra.mxu0 0.0
    %497 = vmatpush.msra.mxu0 0.0
    %498 = vmatpush.msra.mxu0 0.0
    %499 = vmatpush.msra.mxu0 0.0
    %500 = vmatpush.msra.mxu0 0.0
    %501 = vmatpush.msra.mxu0 0.0
    %502 = vmatpush.msra.mxu0 0.0
    %503 = vmatpush.msra.mxu0 %v302
    %504 = vmatpush.msra.mxu0 %v294
    %505 = vmatpush.msra.mxu0 %v286
    %506 = vmatpush.msra.mxu0 %v278
    %507 = vmatmul.f32.gmra.mxu0 %v335
    %v508 = vpop.f32.mrf.mxu0
    %v509 = vadd.f32 %v316, %v508
    %510 = vmatmul.f32.gmra.mxu0 %v338
    %v511 = vpop.f32.mrf.mxu0
    %v512 = vadd.f32 %v321, %v511
    %513 = vmatmul.f32.gmra.mxu0 %v341
    %v514 = vpop.f32.mrf.mxu0
    %v515 = vadd.f32 %v326, %v514
    %516 = vmatmul.f32.gmra.mxu0 %v344
    %v517 = vpop.f32.mrf.mxu0
    %v518 = vadd.f32 %v331, %v517
    %519 = vdwg.mxu0
    %520 = vmatpush.msra.mxu0 0.0
    %521 = vmatpush.msra.mxu0 0.0
    %522 = vmatpush.msra.mxu0 0.0
    %523 = vmatpush.msra.mxu0 0.0
    %524 = vmatpush.msra.mxu0 0.0
    %525 = vmatpush.msra.mxu0 0.0
    %526 = vmatpush.msra.mxu0 0.0
    %527 = vmatpush.msra.mxu0 0.0
    %528 = vmatpush.msra.mxu0 0.0
    %529 = vmatpush.msra.mxu0 0.0
    %530 = vmatpush.msra.mxu0 0.0
    %531 = vmatpush.msra.mxu0 0.0
    %532 = vmatpush.msra.mxu0 %v303
    %533 = vmatpush.msra.mxu0 %v295
    %534 = vmatpush.msra.mxu0 %v287
    %535 = vmatpush.msra.mxu0 %v279
    %536 = vmatmul.f32.gmra.mxu0 %v335
    %v537 = vpop.f32.mrf.mxu0
    %v538 = vadd.f32 %v316, %v537
    %539 = vmatmul.f32.gmra.mxu0 %v338
    %v540 = vpop.f32.mrf.mxu0
    %v541 = vadd.f32 %v321, %v540
    %542 = vmatmul.f32.gmra.mxu0 %v341
    %v543 = vpop.f32.mrf.mxu0
    %v544 = vadd.f32 %v326, %v543
    %545 = vmatmul.f32.gmra.mxu0 %v344
    %v546 = vpop.f32.mrf.mxu0
    %v547 = vadd.f32 %v331, %v546
    %548 = vdwg.mxu0
    %549 = vmatpush.msra.mxu0 0.0
    %550 = vmatpush.msra.mxu0 0.0
    %551 = vmatpush.msra.mxu0 0.0
    %552 = vmatpush.msra.mxu0 0.0
    %553 = vmatpush.msra.mxu0 0.0
    %554 = vmatpush.msra.mxu0 0.0
    %555 = vmatpush.msra.mxu0 0.0
    %556 = vmatpush.msra.mxu0 0.0
    %557 = vmatpush.msra.mxu0 0.0
    %558 = vmatpush.msra.mxu0 0.0
    %559 = vmatpush.msra.mxu0 0.0
    %560 = vmatpush.msra.mxu0 0.0
    %561 = vmatpush.msra.mxu0 %v304
    %562 = vmatpush.msra.mxu0 %v296
    %563 = vmatpush.msra.mxu0 %v288
    %564 = vmatpush.msra.mxu0 %v280
    %565 = vmatmul.f32.gmra.mxu0 %v335
    %v566 = vpop.f32.mrf.mxu0
    %v567 = vadd.f32 %v316, %v566
    %568 = vmatmul.f32.gmra.mxu0 %v338
    %v569 = vpop.f32.mrf.mxu0
    %v570 = vadd.f32 %v321, %v569
    %571 = vmatmul.f32.gmra.mxu0 %v341
    %v572 = vpop.f32.mrf.mxu0
    %v573 = vadd.f32 %v326, %v572
    %574 = vmatmul.f32.gmra.mxu0 %v344
    %v575 = vpop.f32.mrf.mxu0
    %v576 = vadd.f32 %v331, %v575
    %577 = vdwg.mxu0
    %v578 = vtanh.pop %v364
    %v579 = vtanh.pop %v393
    %v580 = vtanh.pop %v422
    %v581 = vtanh.pop %v451
    %v582 = vtanh.pop %v480
    %v583 = vtanh.pop %v509
    %v584 = vtanh.pop %v538
    %v585 = vtanh.pop %v567
    %v586 = vtanh.pop %v367
    %v587 = vtanh.pop %v396
    %v588 = vtanh.pop %v425
    %v589 = vtanh.pop %v454
    %v590 = vtanh.pop %v483
    %v591 = vtanh.pop %v512
    %v592 = vtanh.pop %v541
    %v593 = vtanh.pop %v570
    %v594 = vtanh.pop %v370
    %v595 = vtanh.pop %v399
    %v596 = vtanh.pop %v428
    %v597 = vtanh.pop %v457
    %v598 = vtanh.pop %v486
    %v599 = vtanh.pop %v515
    %v600 = vtanh.pop %v544
    %v601 = vtanh.pop %v573
    %v602 = vtanh.pop %v373
    %v603 = vtanh.pop %v402
    %v604 = vtanh.pop %v431
    %v605 = vtanh.pop %v460
    %v606 = vtanh.pop %v489
    %v607 = vtanh.pop %v518
    %v608 = vtanh.pop %v547
    %v609 = vtanh.pop %v576
    %v610 = vld [vmem:[%s5] sm:$0x1]
    %v611 = vld [vmem:[#allocation2] sm:$0x1]
    %613 = vset.pattern.permute.xlu0 0
    %614 = vperm.xlu0 %613, %v611
    %v615 = vpop.permute.xlu0 %614
    %v617 = vperm.slane %v615, 0
    %v619 = vsel %vm333, %v610, 0
    %621 = vmatpush.msra.mxu0 0.0
    %622 = vmatpush.msra.mxu0 0.0
    %623 = vmatpush.msra.mxu0 0.0
    %624 = vmatpush.msra.mxu0 0.0
    %625 = vmatpush.msra.mxu0 0.0
    %626 = vmatpush.msra.mxu0 0.0
    %627 = vmatpush.msra.mxu0 0.0
    %628 = vmatpush.msra.mxu0 0.0
    %629 = vmatpush.msra.mxu0 0.0
    %630 = vmatpush.msra.mxu0 0.0
    %631 = vmatpush.msra.mxu0 0.0
    %632 = vmatpush.msra.mxu0 0.0
    %633 = vmatpush.msra.mxu0 %v602
    %634 = vmatpush.msra.mxu0 %v594
    %635 = vmatpush.msra.mxu0 %v586
    %636 = vmatpush.msra.mxu0 %v578
    %637 = vmatmul.f32.gmra.mxu0 %v619
    %v638 = vpop.f32.mrf.mxu0
    %v639 = vadd.f32 %v617, %v638
    %640 = vdwg.mxu0
    %641 = vmatpush.msra.mxu0 0.0
    %642 = vmatpush.msra.mxu0 0.0
    %643 = vmatpush.msra.mxu0 0.0
    %644 = vmatpush.msra.mxu0 0.0
    %645 = vmatpush.msra.mxu0 0.0
    %646 = vmatpush.msra.mxu0 0.0
    %647 = vmatpush.msra.mxu0 0.0
    %648 = vmatpush.msra.mxu0 0.0
    %649 = vmatpush.msra.mxu0 0.0
    %650 = vmatpush.msra.mxu0 0.0
    %651 = vmatpush.msra.mxu0 0.0
    %652 = vmatpush.msra.mxu0 0.0
    %653 = vmatpush.msra.mxu0 %v603
    %654 = vmatpush.msra.mxu0 %v595
    %655 = vmatpush.msra.mxu0 %v587
    %656 = vmatpush.msra.mxu0 %v579
    %657 = vmatmul.f32.gmra.mxu0 %v619
    %v658 = vpop.f32.mrf.mxu0
    %v659 = vadd.f32 %v617, %v658
    %660 = vdwg.mxu0
    %661 = vmatpush.msra.mxu0 0.0
    %662 = vmatpush.msra.mxu0 0.0
    %663 = vmatpush.msra.mxu0 0.0
    %664 = vmatpush.msra.mxu0 0.0
    %665 = vmatpush.msra.mxu0 0.0
    %666 = vmatpush.msra.mxu0 0.0
    %667 = vmatpush.msra.mxu0 0.0
    %668 = vmatpush.msra.mxu0 0.0
    %669 = vmatpush.msra.mxu0 0.0
    %670 = vmatpush.msra.mxu0 0.0
    %671 = vmatpush.msra.mxu0 0.0
    %672 = vmatpush.msra.mxu0 0.0
    %673 = vmatpush.msra.mxu0 %v604
    %674 = vmatpush.msra.mxu0 %v596
    %675 = vmatpush.msra.mxu0 %v588
    %676 = vmatpush.msra.mxu0 %v580
    %677 = vmatmul.f32.gmra.mxu0 %v619
    %v678 = vpop.f32.mrf.mxu0
    %v679 = vadd.f32 %v617, %v678
    %680 = vdwg.mxu0
    %681 = vmatpush.msra.mxu0 0.0
    %682 = vmatpush.msra.mxu0 0.0
    %683 = vmatpush.msra.mxu0 0.0
    %684 = vmatpush.msra.mxu0 0.0
    %685 = vmatpush.msra.mxu0 0.0
    %686 = vmatpush.msra.mxu0 0.0
    %687 = vmatpush.msra.mxu0 0.0
    %688 = vmatpush.msra.mxu0 0.0
    %689 = vmatpush.msra.mxu0 0.0
    %690 = vmatpush.msra.mxu0 0.0
    %691 = vmatpush.msra.mxu0 0.0
    %692 = vmatpush.msra.mxu0 0.0
    %693 = vmatpush.msra.mxu0 %v605
    %694 = vmatpush.msra.mxu0 %v597
    %695 = vmatpush.msra.mxu0 %v589
    %696 = vmatpush.msra.mxu0 %v581
    %697 = vmatmul.f32.gmra.mxu0 %v619
    %v698 = vpop.f32.mrf.mxu0
    %v699 = vadd.f32 %v617, %v698
    %700 = vdwg.mxu0
    %701 = vmatpush.msra.mxu0 0.0
    %702 = vmatpush.msra.mxu0 0.0
    %703 = vmatpush.msra.mxu0 0.0
    %704 = vmatpush.msra.mxu0 0.0
    %705 = vmatpush.msra.mxu0 0.0
    %706 = vmatpush.msra.mxu0 0.0
    %707 = vmatpush.msra.mxu0 0.0
    %708 = vmatpush.msra.mxu0 0.0
    %709 = vmatpush.msra.mxu0 0.0
    %710 = vmatpush.msra.mxu0 0.0
    %711 = vmatpush.msra.mxu0 0.0
    %712 = vmatpush.msra.mxu0 0.0
    %713 = vmatpush.msra.mxu0 %v606
    %714 = vmatpush.msra.mxu0 %v598
    %715 = vmatpush.msra.mxu0 %v590
    %716 = vmatpush.msra.mxu0 %v582
    %717 = vmatmul.f32.gmra.mxu0 %v619
    %v718 = vpop.f32.mrf.mxu0
    %v719 = vadd.f32 %v617, %v718
    %720 = vdwg.mxu0
    %721 = vmatpush.msra.mxu0 0.0
    %722 = vmatpush.msra.mxu0 0.0
    %723 = vmatpush.msra.mxu0 0.0
    %724 = vmatpush.msra.mxu0 0.0
    %725 = vmatpush.msra.mxu0 0.0
    %726 = vmatpush.msra.mxu0 0.0
    %727 = vmatpush.msra.mxu0 0.0
    %728 = vmatpush.msra.mxu0 0.0
    %729 = vmatpush.msra.mxu0 0.0
    %730 = vmatpush.msra.mxu0 0.0
    %731 = vmatpush.msra.mxu0 0.0
    %732 = vmatpush.msra.mxu0 0.0
    %733 = vmatpush.msra.mxu0 %v607
    %734 = vmatpush.msra.mxu0 %v599
    %735 = vmatpush.msra.mxu0 %v591
    %736 = vmatpush.msra.mxu0 %v583
    %737 = vmatmul.f32.gmra.mxu0 %v619
    %v738 = vpop.f32.mrf.mxu0
    %v739 = vadd.f32 %v617, %v738
    %740 = vdwg.mxu0
    %741 = vmatpush.msra.mxu0 0.0
    %742 = vmatpush.msra.mxu0 0.0
    %743 = vmatpush.msra.mxu0 0.0
    %744 = vmatpush.msra.mxu0 0.0
    %745 = vmatpush.msra.mxu0 0.0
    %746 = vmatpush.msra.mxu0 0.0
    %747 = vmatpush.msra.mxu0 0.0
    %748 = vmatpush.msra.mxu0 0.0
    %749 = vmatpush.msra.mxu0 0.0
    %750 = vmatpush.msra.mxu0 0.0
    %751 = vmatpush.msra.mxu0 0.0
    %752 = vmatpush.msra.mxu0 0.0
    %753 = vmatpush.msra.mxu0 %v608
    %754 = vmatpush.msra.mxu0 %v600
    %755 = vmatpush.msra.mxu0 %v592
    %756 = vmatpush.msra.mxu0 %v584
    %757 = vmatmul.f32.gmra.mxu0 %v619
    %v758 = vpop.f32.mrf.mxu0
    %v759 = vadd.f32 %v617, %v758
    %760 = vdwg.mxu0
    %761 = vmatpush.msra.mxu0 0.0
    %762 = vmatpush.msra.mxu0 0.0
    %763 = vmatpush.msra.mxu0 0.0
    %764 = vmatpush.msra.mxu0 0.0
    %765 = vmatpush.msra.mxu0 0.0
    %766 = vmatpush.msra.mxu0 0.0
    %767 = vmatpush.msra.mxu0 0.0
    %768 = vmatpush.msra.mxu0 0.0
    %769 = vmatpush.msra.mxu0 0.0
    %770 = vmatpush.msra.mxu0 0.0
    %771 = vmatpush.msra.mxu0 0.0
    %772 = vmatpush.msra.mxu0 0.0
    %773 = vmatpush.msra.mxu0 %v609
    %774 = vmatpush.msra.mxu0 %v601
    %775 = vmatpush.msra.mxu0 %v593
    %776 = vmatpush.msra.mxu0 %v585
    %777 = vmatmul.f32.gmra.mxu0 %v619
    %v778 = vpop.f32.mrf.mxu0
    %v779 = vadd.f32 %v617, %v778
    %780 = vdwg.mxu0
    %v789 = vrot.slane %v659, 7
    %v790 = vrot.slane %v679, 6
    %v791 = vrot.slane %v699, 5
    %v792 = vrot.slane %v719, 4
    %v793 = vrot.slane %v739, 3
    %v794 = vrot.slane %v759, 2
    %v795 = vrot.slane %v779, 1
    %vm796 = vcmask 1040384
    %v797 = vsel %vm796, %v639, %v789
    %vm798 = vcmask 1042434
    %v799 = vsel %vm798, %v790, %v791
    %vm800 = vcmask 1041408
    %v801 = vsel %vm800, %v797, %v799
    %vm802 = vcmask 1044484
    %v803 = vsel %vm802, %v792, %v793
    %vm804 = vcmask 1046534
    %v805 = vsel %vm804, %v794, %v795
    %vm806 = vcmask 1045508
    %v807 = vsel %vm806, %v803, %v805
    %vm808 = vcmask 1043456
    %v809 = vsel %vm808, %v801, %v807
    %811 = vst [vmem:[#allocation3] sm:$0xff] %v809
    // Predicated region
    $region30: #{tpu_custom_call.1} parent=1 // pred_check
      _
    $region31: #{tpu_custom_call.1} parent=1 // pred_check_branch
      %813 = sbr.rel (0) target = $region33
    $region32: #{tpu_custom_call.1} parent=1 // pred_region
      %815 = vsyncadd [#allocation4], 0
      %s817 = sshll.u32 [#allocation3], 4
      %s818 = int_to_ptr.vmem [resolvable:$true] %s817
      %s819 = sshll.u32 %s7, 4
      %s820 = int_to_ptr.hbm [resolvable:$true] %s819
      %822 = dma.vmem_to_hbm [thread:$0]  %s818, 128, %s820, [#allocation4]
    $region33: #{tpu_custom_call.1} parent=1 // pred_fallthru
      _
    // Predicated region
    $region34: #{tpu_custom_call.1} parent=1 // pred_check
      _
    $region35: #{tpu_custom_call.1} parent=1 // pred_check_branch
      %824 = sbr.rel (0) target = $region37
    $region36: #{tpu_custom_call.1} parent=1 // pred_region
      %826 = dma.done [#allocation4], 128
    $region37: #{tpu_custom_call.1} parent=1 // pred_fallthru
      _
    %827 = vsyncpa [#allocation4], 1

</llo_original>
